<compile_context>
chip_gen: v7x
topology: tpu7x:2x2x1
jax: 0.10.0
libtpu: 0.0.40
codegen_flags: <defaults>
</compile_context>

<pallas_src>
import math

import jax
import jax.numpy as jnp
import numpy as np
from jax.experimental import pallas as pl
from jax.experimental.pallas import tpu as pltpu

_LANES = 128
_SUBLANES = 8


def _rows128(x):
    """Lane-dense (rows, 128) view of a large tensor. Free reshape when the
    element count is a multiple of 128 (the common case); zero-pad fallback
    otherwise (zeros are SSE-neutral since both operands get the same pad)."""
    n = int(x.size)
    if n % _LANES == 0:
        return x.reshape(n // _LANES, _LANES)
    pad = (-n) % _LANES
    flat = jnp.concatenate([x.reshape(-1), jnp.zeros((pad,), x.dtype)])
    return flat.reshape(-1, _LANES)


def _lane_dense(x):
    """Free reshape of a small likelihood tensor; never pads (a ragged count
    becomes a (1, n) full-extent block, which is always a legal block)."""
    n = int(x.size)
    if n % _LANES == 0:
        return x.reshape(n // _LANES, _LANES)
    return x.reshape(1, n)


def _make_kernel(tile_rows, rows_total, nt_per_split, needs_mask):
    last_t = nt_per_split - 1

    def kernel(x1_ref, t1_ref, x2_ref, t2_ref,
               y1_ref, z1_ref, y2_ref, z2_ref,
               out_ref, acc1_ref, acc2_ref):
        c = pl.program_id(0)   # core-split ("parallel") axis
        t = pl.program_id(1)   # row-tile ("arbitrary") reduction axis

        @pl.when(t == 0)
        def _():
            acc1_ref[...] = jnp.zeros_like(acc1_ref)
            acc2_ref[...] = jnp.zeros_like(acc2_ref)

        # Cast to f32 in-kernel (inputs arrive in their native dtype).
        d1 = x1_ref[...].astype(jnp.float32) - t1_ref[...].astype(jnp.float32)
        d2 = x2_ref[...].astype(jnp.float32) - t2_ref[...].astype(jnp.float32)

        if needs_mask:
            # Partial final tile: zero out rows past the end of the array
            # (masked BEFORE squaring so OOB garbage can never produce NaNs).
            g = c * nt_per_split + t
            valid = rows_total - g * tile_rows
            row_ids = jax.lax.broadcasted_iota(jnp.int32, (tile_rows, _LANES), 0)
            m = row_ids < valid
            d1 = jnp.where(m, d1, 0.0)
            d2 = jnp.where(m, d2, 0.0)

        # Pure VPU elementwise accumulation in the hot loop; the XLU reduce
        # happens once, at the final grid step.
        acc1_ref[...] += d1 * d1
        acc2_ref[...] += d2 * d2

        @pl.when(t == last_t)
        def _():
            # Tiny likelihood tensors: full blocks, reduced once.  log -> EUP.
            ly1 = jnp.sum(jnp.log(y1_ref[...].astype(jnp.float32)))
            lz1 = jnp.sum(jnp.log(z1_ref[...].astype(jnp.float32)))
            ly2 = jnp.sum(jnp.log(y2_ref[...].astype(jnp.float32)))
            lz2 = jnp.sum(jnp.log(z2_ref[...].astype(jnp.float32)))
            slab = jnp.concatenate(
                [jnp.sum(acc1_ref[...], axis=0, keepdims=True),   # sse1 per lane
                 jnp.sum(acc2_ref[...], axis=0, keepdims=True),   # sse2 per lane
                 jnp.broadcast_to(ly1, (1, _LANES)),
                 jnp.broadcast_to(lz1, (1, _LANES)),
                 jnp.broadcast_to(ly2, (1, _LANES)),
                 jnp.broadcast_to(lz2, (1, _LANES))], axis=0)
            out_ref[...] = slab[None]                             # (1, 6, 128)

    return kernel


def _rd_reductions(x1, t1, x2, t2, y1, z1, y2, z2, *, tile_rows=512):
    # Free lane-dense reshapes (native dtype, no wrapper-side astype/pad).
    x1r, t1r = _rows128(x1), _rows128(t1)
    x2r, t2r = _rows128(x2), _rows128(t2)
    assert x1r.shape == t1r.shape == x2r.shape == t2r.shape, (
        "x1_hat / x2_hat and their targets must share the same element count")
    rows = x1r.shape[0]

    y1r, z1r = _lane_dense(y1), _lane_dense(z1)
    y2r, z2r = _lane_dense(y2), _lane_dense(z2)

    # ---- tiling ------------------------------------------------------------
    tile = min(int(tile_rows), rows)
    if tile < rows:
        tile = max(_SUBLANES, (tile // _SUBLANES) * _SUBLANES)
    nt_total = -(-rows // tile)
    needs_mask = (rows % tile) != 0
    # 2-way core split (v7x megacore); no-op serial loop on 1-TC chips.
    num_splits = 2 if (nt_total >= 2 and nt_total % 2 == 0) else 1
    nt_per_split = nt_total // num_splits

    big_index = lambda c, t: (c * nt_per_split + t, 0)
    big_spec = lambda: pl.BlockSpec((tile, _LANES), big_index)
    full_spec = lambda a: pl.BlockSpec(a.shape, lambda c, t: (0, 0))

    # ---- VMEM budget (sized against v7x's 64 MiB physical VMEM) -------------
    itm = max(x1r.dtype.itemsize, t1r.dtype.itemsize,
              x2r.dtype.itemsize, t2r.dtype.itemsize)
    lik_bytes = sum(int(a.size) * a.dtype.itemsize for a in (y1r, z1r, y2r, z2r))
    est = (4 * 2 * tile * _LANES * itm        # double-buffered image tiles
           + 2 * lik_bytes                    # resident likelihood blocks
           + 2 * tile * _LANES * 4            # f32 accumulator scratch
           + 2 * 6 * _LANES * 4)              # output block
    vmem_limit = int(min(max(2 * est, 32 << 20), 64 << 20))

    # ---- cost estimate for the XLA scheduler --------------------------------
    n_img = int(x1.size) + int(x2.size)
    n_lik = sum(int(a.size) for a in (y1, z1, y2, z2))
    bytes_in = sum(int(a.size) * a.dtype.itemsize
                   for a in (x1, t1, x2, t2, y1, z1, y2, z2))
    cost = pl.CostEstimate(flops=3 * n_img + n_lik,
                           transcendentals=n_lik,
                           bytes_accessed=bytes_in + num_splits * 6 * _LANES * 4)

    kernel = _make_kernel(tile, rows, nt_per_split, needs_mask)
    partials = pl.pallas_call(
        kernel,
        out_shape=jax.ShapeDtypeStruct((num_splits, 6, _LANES), jnp.float32),
        grid_spec=pltpu.PrefetchScalarGridSpec(
            num_scalar_prefetch=0,
            grid=(num_splits, nt_per_split),
            in_specs=[big_spec(), big_spec(), big_spec(), big_spec(),
                      full_spec(y1r), full_spec(z1r),
                      full_spec(y2r), full_spec(z2r)],
            out_specs=pl.BlockSpec((1, 6, _LANES), lambda c, t: (c, 0, 0)),
            scratch_shapes=[pltpu.VMEM((tile, _LANES), jnp.float32),
                            pltpu.VMEM((tile, _LANES), jnp.float32)],
        ),
        compiler_params=pltpu.CompilerParams(
            dimension_semantics=("parallel", "arbitrary"),
            vmem_limit_bytes=vmem_limit),
        cost_estimate=cost,
    )(x1r, t1r, x2r, t2r, y1r, z1r, y2r, z2r)
    return partials


def rate_distortion_loss(output, target1, target2, lmbda=0.01, tile_rows=512):
    """JAX/Pallas port of RateDistortionLoss.forward."""
    N, _, H, W = target1.shape
    num_pixels = float(N * H * W)

    partials = _rd_reductions(
        output['x1_hat'], target1, output['x2_hat'], target2,
        output['likelihoods']['y1'], output['likelihoods']['z1'],
        output['likelihoods']['y2'], output['likelihoods']['z2'],
        tile_rows=tile_rows)

    # SSE rows: summed across cores and lanes. Log sums: identical on every
    # core, so read core 0 / lane 0.
    sse1 = jnp.sum(partials[:, 0, :])
    sse2 = jnp.sum(partials[:, 1, :])
    log_y1 = partials[0, 2, 0]
    log_z1 = partials[0, 3, 0]
    log_y2 = partials[0, 4, 0]
    log_z2 = partials[0, 5, 0]

    # nn.MSELoss averages over ALL elements (N*C*H*W).
    mse1 = sse1 / float(output['x1_hat'].size)
    mse2 = sse2 / float(output['x2_hat'].size)

    inv = 1.0 / (-math.log(2.0) * num_pixels)
    out = {}
    out['bpp_loss'] = (log_y1 + log_z1 + log_y2 + log_z2) * inv
    out['mse_loss'] = mse1 + mse2
    out['bpp1'] = log_y1 * inv + log_z1 * inv
    out['bpp2'] = log_y2 * inv + log_z2 * inv
    out['loss'] = lmbda * (255.0 ** 2) * out['mse_loss'] + out['bpp_loss']
    # TODO(synk): ms_ssim / ms_ssim1 / ms_ssim2 (external pytorch_msssim
    # dependency, undefined in the source module) are not reproduced here.
    out['psnr1'] = 10.0 * jnp.log10(1.0 / mse1)
    out['psnr2'] = 10.0 * jnp.log10(1.0 / mse2)
    return out


def _reference(output, target1, target2, lmbda=0.01):
    """Pure-jnp reference for correctness checking."""
    N, _, H, W = target1.shape
    num_pixels = N * H * W
    inv = 1.0 / (-math.log(2.0) * num_pixels)
    liks = output['likelihoods']
    ref = {}
    ref['bpp_loss'] = sum(jnp.sum(jnp.log(v)) * inv for v in liks.values())
    mse1 = jnp.mean((output['x1_hat'] - target1) ** 2)
    mse2 = jnp.mean((output['x2_hat'] - target2) ** 2)
    ref['mse_loss'] = mse1 + mse2
    ref['bpp1'] = jnp.sum(jnp.log(liks['y1'])) * inv + jnp.sum(jnp.log(liks['z1'])) * inv
    ref['bpp2'] = jnp.sum(jnp.log(liks['y2'])) * inv + jnp.sum(jnp.log(liks['z2'])) * inv
    ref['loss'] = lmbda * 255.0 ** 2 * ref['mse_loss'] + ref['bpp_loss']
    ref['psnr1'] = 10.0 * jnp.log10(1.0 / mse1)
    ref['psnr2'] = 10.0 * jnp.log10(1.0 / mse2)
    return ref


def _run_case(key, img_shape, y_shape, z_shape, tile_rows):
    k = jax.random.split(key, 8)
    x1_hat = jax.random.uniform(k[0], img_shape, jnp.float32)
    x2_hat = jax.random.uniform(k[1], img_shape, jnp.float32)
    target1 = jax.random.uniform(k[2], img_shape, jnp.float32)
    target2 = jax.random.uniform(k[3], img_shape, jnp.float32)
    likelihoods = {
        'y1': jax.random.uniform(k[4], y_shape, jnp.float32, 0.01, 1.0),
        'z1': jax.random.uniform(k[5], z_shape, jnp.float32, 0.01, 1.0),
        'y2': jax.random.uniform(k[6], y_shape, jnp.float32, 0.01, 1.0),
        'z2': jax.random.uniform(k[7], z_shape, jnp.float32, 0.01, 1.0),
    }
    model_output = {'x1_hat': x1_hat, 'x2_hat': x2_hat, 'likelihoods': likelihoods}

    out = rate_distortion_loss(model_output, target1, target2, lmbda=0.01,
                               tile_rows=tile_rows)
    jax.block_until_ready(out)

    ref = _reference(model_output, target1, target2, lmbda=0.01)
    for name in ('bpp_loss', 'mse_loss', 'bpp1', 'bpp2', 'loss', 'psnr1', 'psnr2'):
        np.testing.assert_allclose(np.asarray(out[name]), np.asarray(ref[name]),
                                   rtol=1e-4, atol=1e-5)


if __name__ == "__main__":
    key = jax.random.PRNGKey(0)
    k1, k2 = jax.random.split(key)

    # Case 1: tiny shapes consistent with the module (single-tile fast path).
    #   images NCHW (2,3,16,16); y latents (2,8,4,4); z latents (2,8,2,2)
    _run_case(k1, (2, 3, 16, 16), (2, 8, 4, 4), (2, 8, 2, 2), tile_rows=512)

    # Case 2: exercises the multi-tile grid, partial-tile masking, the 2-way
    # "parallel" core split and the ragged (non-128-multiple) likelihood path.
    _run_case(k2, (2, 3, 40, 128), (2, 8, 10, 32), (2, 8, 3, 5), tile_rows=64)

    print("KERNEL_OK")
</pallas_src>

<mosaic_0001>
module attributes {stable_mosaic.version = 11 : i64} {
  func.func @kernel(%arg0: i32, %arg1: i32, %arg2: memref<12x128xf32, #tpu.memory_space<vmem>>, %arg3: memref<12x128xf32, #tpu.memory_space<vmem>>, %arg4: memref<12x128xf32, #tpu.memory_space<vmem>>, %arg5: memref<12x128xf32, #tpu.memory_space<vmem>>, %arg6: memref<2x128xf32, #tpu.memory_space<vmem>>, %arg7: memref<1x64xf32, #tpu.memory_space<vmem>>, %arg8: memref<2x128xf32, #tpu.memory_space<vmem>>, %arg9: memref<1x64xf32, #tpu.memory_space<vmem>>, %arg10: memref<1x6x128xf32, #tpu.memory_space<vmem>>, %arg11: memref<12x128xf32, #tpu.memory_space<vmem>>, %arg12: memref<12x128xf32, #tpu.memory_space<vmem>>) attributes {dimension_semantics = [#tpu.dimension_semantics<parallel>, #tpu.dimension_semantics<arbitrary>], iteration_bounds = array<i64: 1, 1>, scalar_prefetch = 0 : i64, scratch_operands = 2 : i64, tpu.core_type = #tpu.core_type<tc>, window_params = [{transform_indices = @transform_0, window_bounds = array<i64: 12, 128>}, {transform_indices = @transform_1, window_bounds = array<i64: 12, 128>}, {transform_indices = @transform_2, window_bounds = array<i64: 12, 128>}, {transform_indices = @transform_3, window_bounds = array<i64: 12, 128>}, {pipeline_mode = #tpu.pipeline_mode<synchronous>, transform_indices = @transform_4, window_bounds = array<i64: 2, 128>}, {pipeline_mode = #tpu.pipeline_mode<synchronous>, transform_indices = @transform_5, window_bounds = array<i64: 1, 64>}, {pipeline_mode = #tpu.pipeline_mode<synchronous>, transform_indices = @transform_6, window_bounds = array<i64: 2, 128>}, {pipeline_mode = #tpu.pipeline_mode<synchronous>, transform_indices = @transform_7, window_bounds = array<i64: 1, 64>}, {transform_indices = @transform_8, window_bounds = array<i64: 1, 6, 128>}]} {
    %c0_i32 = arith.constant 0 : i32
    %0 = arith.cmpi eq, %arg1, %c0_i32 : i32
    %1 = arith.extui %0 : i1 to i32
    %c0_i32_0 = arith.constant 0 : i32
    %2 = arith.cmpi ne, %1, %c0_i32_0 : i32
    scf.if %2 {
      %cst = arith.constant 0.000000e+00 : f32
      %20 = vector.broadcast %cst : f32 to vector<12x128xf32>
      %c0_18 = arith.constant 0 : index
      %c0_19 = arith.constant 0 : index
      %21 = vector.load %arg11[%c0_18, %c0_19] : memref<12x128xf32, #tpu.memory_space<vmem>>, vector<12x128xf32>
      tpu.vector_store %arg11[%c0_18, %c0_19], %20 {strides = array<i32>} : memref<12x128xf32, #tpu.memory_space<vmem>>, vector<12x128xf32>,
      %cst_20 = arith.constant 0.000000e+00 : f32
      %22 = vector.broadcast %cst_20 : f32 to vector<12x128xf32>
      %c0_21 = arith.constant 0 : index
      %c0_22 = arith.constant 0 : index
      %23 = vector.load %arg12[%c0_21, %c0_22] : memref<12x128xf32, #tpu.memory_space<vmem>>, vector<12x128xf32>
      tpu.vector_store %arg12[%c0_21, %c0_22], %22 {strides = array<i32>} : memref<12x128xf32, #tpu.memory_space<vmem>>, vector<12x128xf32>,
    } else {
    }
    %c0 = arith.constant 0 : index
    %c0_1 = arith.constant 0 : index
    %3 = vector.load %arg2[%c0, %c0_1] : memref<12x128xf32, #tpu.memory_space<vmem>>, vector<12x128xf32>
    %c0_2 = arith.constant 0 : index
    %c0_3 = arith.constant 0 : index
    %4 = vector.load %arg3[%c0_2, %c0_3] : memref<12x128xf32, #tpu.memory_space<vmem>>, vector<12x128xf32>
    %5 = arith.subf %3, %4 : vector<12x128xf32>
    %c0_4 = arith.constant 0 : index
    %c0_5 = arith.constant 0 : index
    %6 = vector.load %arg4[%c0_4, %c0_5] : memref<12x128xf32, #tpu.memory_space<vmem>>, vector<12x128xf32>
    %c0_6 = arith.constant 0 : index
    %c0_7 = arith.constant 0 : index
    %7 = vector.load %arg5[%c0_6, %c0_7] : memref<12x128xf32, #tpu.memory_space<vmem>>, vector<12x128xf32>
    %8 = arith.subf %6, %7 : vector<12x128xf32>
    %c0_8 = arith.constant 0 : index
    %c0_9 = arith.constant 0 : index
    %9 = vector.load %arg11[%c0_8, %c0_9] : memref<12x128xf32, #tpu.memory_space<vmem>>, vector<12x128xf32>
    %10 = arith.mulf %5, %5 : vector<12x128xf32>
    %11 = arith.addf %9, %10 : vector<12x128xf32>
    %c0_10 = arith.constant 0 : index
    %c0_11 = arith.constant 0 : index
    %12 = vector.load %arg11[%c0_10, %c0_11] : memref<12x128xf32, #tpu.memory_space<vmem>>, vector<12x128xf32>
    tpu.vector_store %arg11[%c0_10, %c0_11], %11 {strides = array<i32>} : memref<12x128xf32, #tpu.memory_space<vmem>>, vector<12x128xf32>,
    %c0_12 = arith.constant 0 : index
    %c0_13 = arith.constant 0 : index
    %13 = vector.load %arg12[%c0_12, %c0_13] : memref<12x128xf32, #tpu.memory_space<vmem>>, vector<12x128xf32>
    %14 = arith.mulf %8, %8 : vector<12x128xf32>
    %15 = arith.addf %13, %14 : vector<12x128xf32>
    %c0_14 = arith.constant 0 : index
    %c0_15 = arith.constant 0 : index
    %16 = vector.load %arg12[%c0_14, %c0_15] : memref<12x128xf32, #tpu.memory_space<vmem>>, vector<12x128xf32>
    tpu.vector_store %arg12[%c0_14, %c0_15], %15 {strides = array<i32>} : memref<12x128xf32, #tpu.memory_space<vmem>>, vector<12x128xf32>,
    %c0_i32_16 = arith.constant 0 : i32
    %17 = arith.cmpi eq, %arg1, %c0_i32_16 : i32
    %18 = arith.extui %17 : i1 to i32
    %c0_i32_17 = arith.constant 0 : i32
    %19 = arith.cmpi ne, %18, %c0_i32_17 : i32
    scf.if %19 {
      %c0_18 = arith.constant 0 : index
      %c0_19 = arith.constant 0 : index
      %20 = vector.load %arg6[%c0_18, %c0_19] : memref<2x128xf32, #tpu.memory_space<vmem>>, vector<2x128xf32>
      %21 = math.log %20 : vector<2x128xf32>
      %22 = vector.shape_cast %21 : vector<2x128xf32> to vector<1x2x128xf32>
      %cst = arith.constant dense<0.000000e+00> : vector<1xf32>
      %23 = vector.multi_reduction <add>, %22, %cst [1, 2] : vector<1x2x128xf32> to vector<1xf32>
      %24 = vector.shape_cast %23 : vector<1xf32> to vector<1x1x1xf32>
      %25 = vector.extract %24[0, 0, 0] : f32 from vector<1x1x1xf32>
      %c0_20 = arith.constant 0 : index
      %c0_21 = arith.constant 0 : index
      %26 = vector.load %arg7[%c0_20, %c0_21] : memref<1x64xf32, #tpu.memory_space<vmem>>, vector<1x64xf32>
      %27 = math.log %26 : vector<1x64xf32>
      %28 = vector.shape_cast %27 : vector<1x64xf32> to vector<1x1x64xf32>
      %cst_22 = arith.constant dense<0.000000e+00> : vector<1xf32>
      %29 = vector.multi_reduction <add>, %28, %cst_22 [1, 2] : vector<1x1x64xf32> to vector<1xf32>
      %30 = vector.shape_cast %29 : vector<1xf32> to vector<1x1x1xf32>
      %31 = vector.extract %30[0, 0, 0] : f32 from vector<1x1x1xf32>
      %c0_23 = arith.constant 0 : index
      %c0_24 = arith.constant 0 : index
      %32 = vector.load %arg8[%c0_23, %c0_24] : memref<2x128xf32, #tpu.memory_space<vmem>>, vector<2x128xf32>
      %33 = math.log %32 : vector<2x128xf32>
      %34 = vector.shape_cast %33 : vector<2x128xf32> to vector<1x2x128xf32>
      %cst_25 = arith.constant dense<0.000000e+00> : vector<1xf32>
      %35 = vector.multi_reduction <add>, %34, %cst_25 [1, 2] : vector<1x2x128xf32> to vector<1xf32>
      %36 = vector.shape_cast %35 : vector<1xf32> to vector<1x1x1xf32>
      %37 = vector.extract %36[0, 0, 0] : f32 from vector<1x1x1xf32>
      %c0_26 = arith.constant 0 : index
      %c0_27 = arith.constant 0 : index
      %38 = vector.load %arg9[%c0_26, %c0_27] : memref<1x64xf32, #tpu.memory_space<vmem>>, vector<1x64xf32>
      %39 = math.log %38 : vector<1x64xf32>
      %40 = vector.shape_cast %39 : vector<1x64xf32> to vector<1x1x64xf32>
      %cst_28 = arith.constant dense<0.000000e+00> : vector<1xf32>
      %41 = vector.multi_reduction <add>, %40, %cst_28 [1, 2] : vector<1x1x64xf32> to vector<1xf32>
      %42 = vector.shape_cast %41 : vector<1xf32> to vector<1x1x1xf32>
      %43 = vector.extract %42[0, 0, 0] : f32 from vector<1x1x1xf32>
      %c0_29 = arith.constant 0 : index
      %c0_30 = arith.constant 0 : index
      %44 = vector.load %arg11[%c0_29, %c0_30] : memref<12x128xf32, #tpu.memory_space<vmem>>, vector<12x128xf32>
      %cst_31 = arith.constant dense<0.000000e+00> : vector<128xf32>
      %45 = vector.multi_reduction <add>, %44, %cst_31 [0] : vector<12x128xf32> to vector<128xf32>
      %46 = vector.shape_cast %45 : vector<128xf32> to vector<1x128xf32>
      %c0_32 = arith.constant 0 : index
      %c0_33 = arith.constant 0 : index
      %47 = vector.load %arg12[%c0_32, %c0_33] : memref<12x128xf32, #tpu.memory_space<vmem>>, vector<12x128xf32>
      %cst_34 = arith.constant dense<0.000000e+00> : vector<128xf32>
      %48 = vector.multi_reduction <add>, %47, %cst_34 [0] : vector<12x128xf32> to vector<128xf32>
      %49 = vector.shape_cast %48 : vector<128xf32> to vector<1x128xf32>
      %50 = vector.broadcast %25 : f32 to vector<1x128xf32>
      %51 = vector.broadcast %31 : f32 to vector<1x128xf32>
      %52 = vector.broadcast %37 : f32 to vector<1x128xf32>
      %53 = vector.broadcast %43 : f32 to vector<1x128xf32>
      %54 = tpu.concatenate %46, %49, %50, %51, %52, %53 in 0 : vector<1x128xf32>, vector<1x128xf32>, vector<1x128xf32>, vector<1x128xf32>, vector<1x128xf32>, vector<1x128xf32> -> vector<6x128xf32>
      %55 = vector.shape_cast %54 : vector<6x128xf32> to vector<1x6x128xf32>
      %c0_35 = arith.constant 0 : index
      %c0_36 = arith.constant 0 : index
      %c0_37 = arith.constant 0 : index
      %56 = vector.load %arg10[%c0_35, %c0_36, %c0_37] : memref<1x6x128xf32, #tpu.memory_space<vmem>>, vector<1x6x128xf32>
      tpu.vector_store %arg10[%c0_35, %c0_36, %c0_37], %55 {strides = array<i32>} : memref<1x6x128xf32, #tpu.memory_space<vmem>>, vector<1x6x128xf32>,
    } else {
    }
    return
  }
  func.func @transform_0(%arg0: i32, %arg1: i32) -> (i32, i32) {
    %c1_i32 = arith.constant 1 : i32
    %0 = arith.muli %arg0, %c1_i32 : i32
    %1 = arith.addi %0, %arg1 : i32
    %c0_i32 = arith.constant 0 : i32
    %c0_i32_0 = arith.constant 0 : i32
    return %1, %c0_i32 : i32, i32
  }
  func.func @transform_1(%arg0: i32, %arg1: i32) -> (i32, i32) {
    %c1_i32 = arith.constant 1 : i32
    %0 = arith.muli %arg0, %c1_i32 : i32
    %1 = arith.addi %0, %arg1 : i32
    %c0_i32 = arith.constant 0 : i32
    %c0_i32_0 = arith.constant 0 : i32
    return %1, %c0_i32 : i32, i32
  }
  func.func @transform_2(%arg0: i32, %arg1: i32) -> (i32, i32) {
    %c1_i32 = arith.constant 1 : i32
    %0 = arith.muli %arg0, %c1_i32 : i32
    %1 = arith.addi %0, %arg1 : i32
    %c0_i32 = arith.constant 0 : i32
    %c0_i32_0 = arith.constant 0 : i32
    return %1, %c0_i32 : i32, i32
  }
  func.func @transform_3(%arg0: i32, %arg1: i32) -> (i32, i32) {
    %c1_i32 = arith.constant 1 : i32
    %0 = arith.muli %arg0, %c1_i32 : i32
    %1 = arith.addi %0, %arg1 : i32
    %c0_i32 = arith.constant 0 : i32
    %c0_i32_0 = arith.constant 0 : i32
    return %1, %c0_i32 : i32, i32
  }
  func.func @transform_4(%arg0: i32, %arg1: i32) -> (i32, i32) {
    %c0_i32 = arith.constant 0 : i32
    %c0_i32_0 = arith.constant 0 : i32
    %c0_i32_1 = arith.constant 0 : i32
    return %c0_i32, %c0_i32_0 : i32, i32
  }
  func.func @transform_5(%arg0: i32, %arg1: i32) -> (i32, i32) {
    %c0_i32 = arith.constant 0 : i32
    %c0_i32_0 = arith.constant 0 : i32
    %c0_i32_1 = arith.constant 0 : i32
    return %c0_i32, %c0_i32_0 : i32, i32
  }
  func.func @transform_6(%arg0: i32, %arg1: i32) -> (i32, i32) {
    %c0_i32 = arith.constant 0 : i32
    %c0_i32_0 = arith.constant 0 : i32
    %c0_i32_1 = arith.constant 0 : i32
    return %c0_i32, %c0_i32_0 : i32, i32
  }
  func.func @transform_7(%arg0: i32, %arg1: i32) -> (i32, i32) {
    %c0_i32 = arith.constant 0 : i32
    %c0_i32_0 = arith.constant 0 : i32
    %c0_i32_1 = arith.constant 0 : i32
    return %c0_i32, %c0_i32_0 : i32, i32
  }
  func.func @transform_8(%arg0: i32, %arg1: i32) -> (i32, i32, i32) {
    %c0_i32 = arith.constant 0 : i32
    %c0_i32_0 = arith.constant 0 : i32
    %c0_i32_1 = arith.constant 0 : i32
    return %arg0, %c0_i32, %c0_i32_0 : i32, i32, i32
  }
}

</mosaic_0001>

<llo_original>
// kernel: tpu_custom_call.1
$region0: #{tpu_custom_call.1}
  #allocation0 [shape = 'u32[]', space=smem, size = 0x4, offset = 0x4, fixed_abs, tag = 'smem constant byte address 0x4 - core index']
  #allocation1 [shape = 'u32[144,128]{1,0:T(1,128)}', space=vmem, size = 0x12000, scoped, tag = 'internal scratch']
  #allocation2 [shape = 'f32[12,128]{1,0:T(8,128)}', space=vmem, size = 0x2000, scoped, tag = 'scratch operand']
  #allocation3 [shape = 'f32[12,128]{1,0:T(8,128)}', space=vmem, size = 0x2000, scoped, tag = 'scratch operand']
  %s0 = inlined_call_operand.hbm [shape: f32[12,128], index: 0, kind: input, shape index: {}]
  %s1 = inlined_call_operand.hbm [shape: f32[12,128], index: 1, kind: input, shape index: {}]
  %s2 = inlined_call_operand.hbm [shape: f32[12,128], index: 2, kind: input, shape index: {}]
  %s3 = inlined_call_operand.hbm [shape: f32[12,128], index: 3, kind: input, shape index: {}]
  %s4 = inlined_call_operand.vmem [shape: f32[2,128], index: 4, kind: input, shape index: {}]
  %s5 = inlined_call_operand.vmem [shape: f32[1,64], index: 5, kind: input, shape index: {}]
  %s6 = inlined_call_operand.vmem [shape: f32[2,128], index: 6, kind: input, shape index: {}]
  %s7 = inlined_call_operand.vmem [shape: f32[1,64], index: 7, kind: input, shape index: {}]
  %s8 = inlined_call_operand.vmem [shape: f32[1,6,128], index: 8, kind: output, shape index: {}]
  %s9 = sld [smem:[#allocation0]]
  $region66: #{tpu_custom_call.1} parent=0
    _
  %s11 = ssub.s32 1, %s9
  %s12 = scalar_select 0, %s11, %s9
  $region1: #{tpu_custom_call.1} parent=0
    #allocation4 [shape = 'u8[8192]{0}', space=vmem, size = 0x2000, scoped, tag = 'input window, operand 0, single buffered']
    #allocation5 [shape = 's32[1]{0}', space=sflag, size = 0x4, scoped, tag = 'scoped memory for tpu_custom_call.1']
    #allocation6 [shape = 'u8[8192]{0}', space=vmem, size = 0x2000, scoped, tag = 'input window, operand 1, single buffered']
    #allocation7 [shape = 's32[1]{0}', space=sflag, size = 0x4, scoped, tag = 'scoped memory for tpu_custom_call.1']
    #allocation8 [shape = 'u8[8192]{0}', space=vmem, size = 0x2000, scoped, tag = 'input window, operand 2, single buffered']
    #allocation9 [shape = 'u8[8192]{0}', space=vmem, size = 0x2000, scoped, tag = 'input window, operand 3, single buffered']
    #allocation10 [shape = 's32[1]{0}', space=sflag, size = 0x4, scoped, tag = 'scoped memory for tpu_custom_call.1']
    %13 = vsyncpa [#allocation5], 0
    %14 = vsyncpa [#allocation7], 0
    %15 = vsyncpa [#allocation10], 0
    // Predicated region
    $region2: #{tpu_custom_call.1} parent=1 // pred_check
      _
    $region3: #{tpu_custom_call.1} parent=1 // pred_check_branch
      %17 = sbr.rel (0) target = $region5
    $region4: #{tpu_custom_call.1} parent=1 // pred_region
      %s18 = sadd.s32 0, 0
      %s19 = smul.u32 2, %s18
      %s21 = ssub.s32 256, 256
      %22 = vsyncadd [#allocation5], %s21
      %s23 = smul.addr %s19, 128
      %s24 = scalar_lea.hbm %s0, %s23
      %s25 = sshll.u32 [#allocation4], 4
      %s26 = int_to_ptr.vmem [resolvable:$true] %s25
      %31 = dma.hbm_to_vmem [thread:$0]  %s24, 256, %s26, [#allocation5], 128, 128, 8
    $region5: #{tpu_custom_call.1} parent=1 // pred_fallthru
      _
    // Predicated region
    $region6: #{tpu_custom_call.1} parent=1 // pred_check
      _
    $region7: #{tpu_custom_call.1} parent=1 // pred_check_branch
      %33 = sbr.rel (0) target = $region9
    $region8: #{tpu_custom_call.1} parent=1 // pred_region
      %s34 = sadd.s32 0, 0
      %s35 = smul.u32 2, %s34
      %s37 = ssub.s32 256, 256
      %38 = vsyncadd [#allocation7], %s37
      %s39 = smul.addr %s35, 128
      %s40 = scalar_lea.hbm %s1, %s39
      %s41 = sshll.u32 [#allocation6], 4
      %s42 = int_to_ptr.vmem [resolvable:$true] %s41
      %47 = dma.hbm_to_vmem [thread:$0]  %s40, 256, %s42, [#allocation7], 128, 128, 8
    $region9: #{tpu_custom_call.1} parent=1 // pred_fallthru
      _
    // Predicated region
    $region10: #{tpu_custom_call.1} parent=1 // pred_check
      _
    $region11: #{tpu_custom_call.1} parent=1 // pred_check_branch
      %49 = sbr.rel (0) target = $region13
    $region12: #{tpu_custom_call.1} parent=1 // pred_region
      %s50 = sadd.s32 0, 0
      %s51 = smul.u32 2, %s50
      %s53 = ssub.s32 256, 256
      %54 = vsyncadd [#allocation7], %s53
      %s55 = smul.addr %s51, 128
      %s56 = scalar_lea.hbm %s2, %s55
      %s57 = sshll.u32 [#allocation8], 4
      %s58 = int_to_ptr.vmem [resolvable:$true] %s57
      %63 = dma.hbm_to_vmem [thread:$0]  %s56, 256, %s58, [#allocation7], 128, 128, 8
    $region13: #{tpu_custom_call.1} parent=1 // pred_fallthru
      _
    // Predicated region
    $region14: #{tpu_custom_call.1} parent=1 // pred_check
      _
    $region15: #{tpu_custom_call.1} parent=1 // pred_check_branch
      %65 = sbr.rel (0) target = $region17
    $region16: #{tpu_custom_call.1} parent=1 // pred_region
      %s66 = sadd.s32 0, 0
      %s67 = smul.u32 2, %s66
      %s69 = ssub.s32 256, 256
      %70 = vsyncadd [#allocation10], %s69
      %s71 = smul.addr %s67, 128
      %s72 = scalar_lea.hbm %s3, %s71
      %s73 = sshll.u32 [#allocation9], 4
      %s74 = int_to_ptr.vmem [resolvable:$true] %s73
      %79 = dma.hbm_to_vmem [thread:$0]  %s72, 256, %s74, [#allocation10], 128, 128, 8
    $region17: #{tpu_custom_call.1} parent=1 // pred_fallthru
      _
    // Predicated region
    $region18: #{tpu_custom_call.1} parent=1 // pred_check
      _
    $region19: #{tpu_custom_call.1} parent=1 // pred_check_branch
      %81 = sbr.rel (0) target = $region21
    $region20: #{tpu_custom_call.1} parent=1 // pred_region
      _
    $region21: #{tpu_custom_call.1} parent=1 // pred_fallthru
      _
    // Predicated region
    $region22: #{tpu_custom_call.1} parent=1 // pred_check
      _
    $region23: #{tpu_custom_call.1} parent=1 // pred_check_branch
      %83 = sbr.rel (0) target = $region25
    $region24: #{tpu_custom_call.1} parent=1 // pred_region
      _
    $region25: #{tpu_custom_call.1} parent=1 // pred_fallthru
      _
    // Predicated region
    $region26: #{tpu_custom_call.1} parent=1 // pred_check
      _
    $region27: #{tpu_custom_call.1} parent=1 // pred_check_branch
      %85 = sbr.rel (0) target = $region29
    $region28: #{tpu_custom_call.1} parent=1 // pred_region
      _
    $region29: #{tpu_custom_call.1} parent=1 // pred_fallthru
      _
    // Predicated region
    $region30: #{tpu_custom_call.1} parent=1 // pred_check
      _
    $region31: #{tpu_custom_call.1} parent=1 // pred_check_branch
      %87 = sbr.rel (0) target = $region33
    $region32: #{tpu_custom_call.1} parent=1 // pred_region
      _
    $region33: #{tpu_custom_call.1} parent=1 // pred_fallthru
      _
    // Predicated region
    $region34: #{tpu_custom_call.1} parent=1 // pred_check
      _
    $region35: #{tpu_custom_call.1} parent=1 // pred_check_branch
      %89 = sbr.rel (0) target = $region37
    $region36: #{tpu_custom_call.1} parent=1 // pred_region
      %90 = dma.done [#allocation5], 256
    $region37: #{tpu_custom_call.1} parent=1 // pred_fallthru
      _
    // Predicated region
    $region38: #{tpu_custom_call.1} parent=1 // pred_check
      _
    $region39: #{tpu_custom_call.1} parent=1 // pred_check_branch
      %92 = sbr.rel (0) target = $region41
    $region40: #{tpu_custom_call.1} parent=1 // pred_region
      %93 = dma.done [#allocation7], 256
    $region41: #{tpu_custom_call.1} parent=1 // pred_fallthru
      _
    // Predicated region
    $region42: #{tpu_custom_call.1} parent=1 // pred_check
      _
    $region43: #{tpu_custom_call.1} parent=1 // pred_check_branch
      %95 = sbr.rel (0) target = $region45
    $region44: #{tpu_custom_call.1} parent=1 // pred_region
      %96 = dma.done [#allocation7], 256
    $region45: #{tpu_custom_call.1} parent=1 // pred_fallthru
      _
    // Predicated region
    $region46: #{tpu_custom_call.1} parent=1 // pred_check
      _
    $region47: #{tpu_custom_call.1} parent=1 // pred_check_branch
      %98 = sbr.rel (0) target = $region49
    $region48: #{tpu_custom_call.1} parent=1 // pred_region
      %99 = dma.done [#allocation10], 256
    $region49: #{tpu_custom_call.1} parent=1 // pred_fallthru
      _
    %s100 = sadd.s32 0, 0
    %s101 = smul.u32 2, %s100
    %s102 = sadd.s32 0, 0
    %s103 = smul.u32 2, %s102
    %s104 = sadd.s32 0, 0
    %s105 = smul.u32 2, %s104
    %s106 = sadd.s32 0, 0
    %s107 = smul.u32 2, %s106
    %p108 = scmp.eq.s32.totalorder 0, 0
    // Predicated region
    $region50: #{tpu_custom_call.1} parent=1 // pred_check
      %p109 = pneg %p108
    $region51: #{tpu_custom_call.1} parent=1 // pred_check_branch
      %111 = sbr.rel (%p109) target = $region53
    $region52: #{tpu_custom_call.1} parent=1 // pred_region
      %112 = vst [vmem:[#allocation2] sm:$0xff] 0.0
      %113 = vst [vmem:[#allocation2 + $0x8] sm:$0xf] 0.0
      %114 = vst [vmem:[#allocation3] sm:$0xff] 0.0
      %115 = vst [vmem:[#allocation3 + $0x8] sm:$0xf] 0.0
    $region53: #{tpu_custom_call.1} parent=1 // pred_fallthru
      _
    %v116 = vld [vmem:[#allocation4] sm:$0xff]
    %v117 = vld [vmem:[#allocation4 + $0x8] sm:$0xf]
    %v118 = vld [vmem:[#allocation6] sm:$0xff]
    %v119 = vld [vmem:[#allocation6 + $0x8] sm:$0xf]
    %v120 = vsub.f32 %v116, %v118
    %v121 = vsub.f32 %v117, %v119
    %v122 = vld [vmem:[#allocation8] sm:$0xff]
    %v123 = vld [vmem:[#allocation8 + $0x8] sm:$0xf]
    %v124 = vld [vmem:[#allocation9] sm:$0xff]
    %v125 = vld [vmem:[#allocation9 + $0x8] sm:$0xf]
    %v126 = vsub.f32 %v122, %v124
    %v127 = vsub.f32 %v123, %v125
    %v128 = vld [vmem:[#allocation2] sm:$0xff]
    %v129 = vld [vmem:[#allocation2 + $0x8] sm:$0xf]
    %v130 = vmul.f32 %v120, %v120
    %v131 = vmul.f32 %v121, %v121
    %v132 = vadd.f32 %v128, %v130
    %v133 = vadd.f32 %v129, %v131
    %134 = vst [vmem:[#allocation2] sm:$0xff] %v132
    %135 = vst [vmem:[#allocation2 + $0x8] sm:$0xf] %v133
    %v136 = vld [vmem:[#allocation3] sm:$0xff]
    %v137 = vld [vmem:[#allocation3 + $0x8] sm:$0xf]
    %v138 = vmul.f32 %v126, %v126
    %v139 = vmul.f32 %v127, %v127
    %v140 = vadd.f32 %v136, %v138
    %v141 = vadd.f32 %v137, %v139
    %142 = vst [vmem:[#allocation3] sm:$0xff] %v140
    %143 = vst [vmem:[#allocation3 + $0x8] sm:$0xf] %v141
    // Predicated region
    $region54: #{tpu_custom_call.1} parent=1 // pred_check
      %p144 = pneg %p108
    $region55: #{tpu_custom_call.1} parent=1 // pred_check_branch
      %146 = sbr.rel (%p144) target = $region57
    $region56: #{tpu_custom_call.1} parent=1 // pred_region
      %v147 = vld [vmem:[%s4] sm:$0x3]
      %v148 = vlog2.pop %v147
      %v149 = vmul.f32 %v148, 0.6931472
      %vm150 = vcmask 1041408
      %v151 = vsel %vm150, %v149, 0.0
      %152 = vadd.xlane.f32.xlu0 %v151
      %v153 = vpop.xlane.xlu0 %152
      %v154 = vrot.slane %v153, 4
      %v155 = vadd.f32 %v153, %v154
      %v156 = vrot.slane %v155, 2
      %v157 = vadd.f32 %v155, %v156
      %v158 = vrot.slane %v157, 1
      %v159 = vadd.f32 %v157, %v158
      %s160 = vtos %v159
      %v161 = vld [vmem:[%s5] sm:$0x1]
      %v162 = vlog2.pop %v161
      %v163 = vmul.f32 %v162, 0.6931472
      %vm164 = vcmask 516096
      %v165 = vsel %vm164, %v163, 0.0
      %166 = vadd.xlane.f32.xlu0 %v165
      %v167 = vpop.xlane.xlu0 %166
      %v168 = vrot.slane %v167, 4
      %v169 = vadd.f32 %v167, %v168
      %v170 = vrot.slane %v169, 2
      %v171 = vadd.f32 %v169, %v170
      %v172 = vrot.slane %v171, 1
      %v173 = vadd.f32 %v171, %v172
      %s174 = vtos %v173
      %v175 = vld [vmem:[%s6] sm:$0x3]
      %v176 = vlog2.pop %v175
      %v177 = vmul.f32 %v176, 0.6931472
      %v178 = vsel %vm150, %v177, 0.0
      %179 = vadd.xlane.f32.xlu0 %v178
      %v180 = vpop.xlane.xlu0 %179
      %v181 = vrot.slane %v180, 4
      %v182 = vadd.f32 %v180, %v181
      %v183 = vrot.slane %v182, 2
      %v184 = vadd.f32 %v182, %v183
      %v185 = vrot.slane %v184, 1
      %v186 = vadd.f32 %v184, %v185
      %s187 = vtos %v186
      %v188 = vld [vmem:[%s7] sm:$0x1]
      %v189 = vlog2.pop %v188
      %v190 = vmul.f32 %v189, 0.6931472
      %v191 = vsel %vm164, %v190, 0.0
      %192 = vadd.xlane.f32.xlu0 %v191
      %v193 = vpop.xlane.xlu0 %192
      %v194 = vrot.slane %v193, 4
      %v195 = vadd.f32 %v193, %v194
      %v196 = vrot.slane %v195, 2
      %v197 = vadd.f32 %v195, %v196
      %v198 = vrot.slane %v197, 1
      %v199 = vadd.f32 %v197, %v198
      %s200 = vtos %v199
      %v201 = vld [vmem:[#allocation2] sm:$0xff]
      %v202 = vld [vmem:[#allocation2 + $0x8] sm:$0xf]
      %vm203 = vcmask 1043456
      %v204 = vsel %vm203, %v202, 0.0
      %v205 = vadd.f32 %v201, %v204
      %v206 = vrot.slane %v205, 4
      %v207 = vadd.f32 %v205, %v206
      %v208 = vrot.slane %v207, 2
      %v209 = vadd.f32 %v207, %v208
      %v210 = vrot.slane %v209, 1
      %v211 = vadd.f32 %v209, %v210
      %v212 = vld [vmem:[#allocation3] sm:$0xff]
      %v213 = vld [vmem:[#allocation3 + $0x8] sm:$0xf]
      %v214 = vsel %vm203, %v213, 0.0
      %v215 = vadd.f32 %v212, %v214
      %v216 = vrot.slane %v215, 4
      %v217 = vadd.f32 %v215, %v216
      %v218 = vrot.slane %v217, 2
      %v219 = vadd.f32 %v217, %v218
      %v220 = vrot.slane %v219, 1
      %v221 = vadd.f32 %v219, %v220
      %v222 = vstv %s160
      %v223 = vstv %s174
      %v224 = vstv %s187
      %v225 = vstv %s200
      %vm226 = vcmask 1040384
      %v227 = vsel %vm226, %v211, %v221
      %v228 = vsel %vm150, %v227, %v222
      %vm229 = vcmask 1042432
      %v230 = vsel %vm229, %v228, %v223
      %v231 = vsel %vm203, %v230, %v224
      %vm232 = vcmask 1044480
      %v233 = vsel %vm232, %v231, %v225
      %234 = vst [vmem:[%s8] sm:$0x3f] %v233
    $region57: #{tpu_custom_call.1} parent=1 // pred_fallthru
      _
    // Predicated region
    $region58: #{tpu_custom_call.1} parent=1 // pred_check
      _
    $region59: #{tpu_custom_call.1} parent=1 // pred_check_branch
      %236 = sbr.rel (0) target = $region61
    $region60: #{tpu_custom_call.1} parent=1 // pred_region
      _
    $region61: #{tpu_custom_call.1} parent=1 // pred_fallthru
      _
    // Predicated region
    $region62: #{tpu_custom_call.1} parent=1 // pred_check
      _
    $region63: #{tpu_custom_call.1} parent=1 // pred_check_branch
      %238 = sbr.rel (0) target = $region65
    $region64: #{tpu_custom_call.1} parent=1 // pred_region
      _
    $region65: #{tpu_custom_call.1} parent=1 // pred_fallthru
      _
    %239 = vsyncpa [#allocation5], 1
    %240 = vsyncpa [#allocation7], 1
    %241 = vsyncpa [#allocation10], 1

</llo_original>
